<compile_context>
chip_gen: v5e
topology: v5e:2x2
jax: 0.10.0
libtpu: 0.0.40
codegen_flags: <defaults>
</compile_context>

<pallas_src>
import functools

import jax
import jax.numpy as jnp
from jax.experimental import pallas as pl
from jax.experimental.pallas import tpu as pltpu

_LANE = 128
_SUBLANE = 8


def _round_up(n, m):
    return ((n + m - 1) // m) * m


# ---------------------------------------------------------------------------
# Kernel 1: out = l2_normalize(x @ W + b, dim=-1)
# ---------------------------------------------------------------------------
def _linear_l2norm_kernel(x_ref, w_ref, b_ref, o_ref):
    # MXU matmul with f32 accumulation; bias add + normalization in f32.
    y = jnp.dot(x_ref[...], w_ref[...], preferred_element_type=jnp.float32)
    y = y + b_ref[...]
    ssq = jnp.sum(y * y, axis=-1, keepdims=True)
    # F.normalize eps=1e-12 on the norm  <=>  1e-24 clamp on the squared norm.
    inv = jax.lax.rsqrt(jnp.maximum(ssq, 1e-24))          # EUP slot
    o_ref[...] = (y * inv).astype(o_ref.dtype)


def linear_l2_normalize(x, w, b, *, block_b=None,
                        compute_dtype=jnp.bfloat16,
                        out_dtype=jnp.float32,
                        vmem_budget_bytes=32 * 1024 * 1024):
    """x: [B, D_in], w: [D_in, D_out], b: [D_out] -> [B, D_out], rows L2-normalized."""
    B, D_in = x.shape
    D_in_w, D_out = w.shape
    assert D_in_w == D_in and b.shape == (D_out,)

    in_dtype = jnp.dtype(compute_dtype) if compute_dtype is not None else x.dtype
    isz = jnp.dtype(in_dtype).itemsize

    # Lane-dense padding: zero-padded W/bias columns give y == 0 there, so the
    # L2 norm over padded lanes is unchanged; padded rows are sliced off below.
    d_in_p = _round_up(D_in, _LANE)
    d_out_p = _round_up(D_out, _LANE)

    # Budget: W + bias are grid-resident; x / out tiles are double-buffered.
    resident = d_in_p * d_out_p * isz + d_out_p * 4
    per_row = 2 * d_in_p * isz + 2 * d_out_p * 4
    if block_b is None:
        cap = max((vmem_budget_bytes - resident) // per_row, _SUBLANE)
        cap = max((cap // _SUBLANE) * _SUBLANE, _SUBLANE)
        block_b = min(_round_up(B, _SUBLANE), cap, 1024)
    block_b = max((block_b // _SUBLANE) * _SUBLANE, _SUBLANE)

    b_p = _round_up(B, block_b)          # pad ragged batch instead of asserting
    grid = (b_p // block_b,)

    x_pad = jnp.zeros((b_p, d_in_p), in_dtype).at[:B, :D_in].set(x.astype(in_dtype))
    w_pad = jnp.zeros((d_in_p, d_out_p), in_dtype).at[:D_in, :D_out].set(w.astype(in_dtype))
    bias_pad = jnp.zeros((1, d_out_p), jnp.float32).at[0, :D_out].set(b.astype(jnp.float32))

    vmem_needed = resident + block_b * per_row
    vmem_limit = int(min(max(vmem_needed + (4 << 20), 32 << 20), 64 << 20))

    cost = pl.CostEstimate(
        flops=2 * b_p * d_in_p * d_out_p,
        transcendentals=b_p,                                  # one rsqrt per row
        bytes_accessed=int(x_pad.size * isz + w_pad.size * isz
                           + bias_pad.size * 4 + b_p * d_out_p * 4),
    )

    out = pl.pallas_call(
        _linear_l2norm_kernel,
        out_shape=jax.ShapeDtypeStruct((b_p, d_out_p), out_dtype),
        grid_spec=pltpu.PrefetchScalarGridSpec(
            num_scalar_prefetch=0,
            grid=grid,
            in_specs=[
                pl.BlockSpec((block_b, d_in_p), lambda i: (i, 0)),
                pl.BlockSpec((d_in_p, d_out_p), lambda i: (0, 0)),
                pl.BlockSpec((1, d_out_p), lambda i: (0, 0)),
            ],
            out_specs=pl.BlockSpec((block_b, d_out_p), lambda i: (i, 0)),
        ),
        compiler_params=pltpu.CompilerParams(
            dimension_semantics=("parallel",),
            vmem_limit_bytes=vmem_limit,
        ),
        cost_estimate=cost,
    )(x_pad, w_pad, bias_pad)

    return out[:B, :D_out]


# ---------------------------------------------------------------------------
# Kernel 2: out = l2_normalize(mean_s(Embedding(tokens)) @ W + b, dim=-1)
# ---------------------------------------------------------------------------
def _text_encoder_kernel(tok_ref, emb_ref, w_ref, b_ref, o_ref):
    tok = tok_ref[...]                                       # (tb, S) int32
    tb, seq = tok.shape
    vocab_p = emb_ref.shape[0]
    ids = jax.lax.broadcasted_iota(jnp.int32, (tb, vocab_p), 1)
    counts = jnp.zeros((tb, vocab_p), jnp.float32)
    for s in range(seq):                                     # static unroll (seq small)
        counts = counts + (tok[:, s:s + 1] == ids).astype(jnp.float32)
    # (counts / S) @ emb  ==  embedding(tokens).mean(dim=1)
    mean_emb = jnp.dot(counts * (1.0 / seq), emb_ref[...],
                       preferred_element_type=jnp.float32)
    y = jnp.dot(mean_emb, w_ref[...], preferred_element_type=jnp.float32) + b_ref[...]
    ssq = jnp.sum(y * y, axis=-1, keepdims=True)
    o_ref[...] = (y * jax.lax.rsqrt(jnp.maximum(ssq, 1e-24))).astype(o_ref.dtype)


def text_encoder(tokens, emb_table, w, b, *, block_b=None, out_dtype=jnp.float32):
    """tokens: [B, S] int, emb_table: [V, E], w: [E, D_out], b: [D_out] -> [B, D_out]."""
    B, S = tokens.shape
    V, E = emb_table.shape
    E_w, D_out = w.shape
    assert E_w == E and b.shape == (D_out,)

    v_p = _round_up(V, _LANE)
    e_p = _round_up(E, _LANE)
    d_out_p = _round_up(D_out, _LANE)

    if block_b is None:
        block_b = min(_round_up(B, _SUBLANE), 256)
    block_b = max((block_b // _SUBLANE) * _SUBLANE, _SUBLANE)
    b_p = _round_up(B, block_b)
    grid = (b_p // block_b,)

    tok_pad = jnp.zeros((b_p, S), jnp.int32).at[:B].set(tokens.astype(jnp.int32))
    emb_pad = jnp.zeros((v_p, e_p), jnp.float32).at[:V, :E].set(emb_table.astype(jnp.float32))
    w_pad = jnp.zeros((e_p, d_out_p), jnp.float32).at[:E, :D_out].set(w.astype(jnp.float32))
    bias_pad = jnp.zeros((1, d_out_p), jnp.float32).at[0, :D_out].set(b.astype(jnp.float32))

    cost = pl.CostEstimate(
        flops=2 * b_p * (v_p * e_p + e_p * d_out_p),
        transcendentals=b_p,
        bytes_accessed=int(tok_pad.size * 4 + emb_pad.size * 4 + w_pad.size * 4
                           + bias_pad.size * 4 + b_p * d_out_p * 4),
    )

    out = pl.pallas_call(
        _text_encoder_kernel,
        out_shape=jax.ShapeDtypeStruct((b_p, d_out_p), out_dtype),
        grid_spec=pltpu.PrefetchScalarGridSpec(
            num_scalar_prefetch=0,
            grid=grid,
            in_specs=[
                pl.BlockSpec((block_b, S), lambda i: (i, 0)),
                pl.BlockSpec((v_p, e_p), lambda i: (0, 0)),
                pl.BlockSpec((e_p, d_out_p), lambda i: (0, 0)),
                pl.BlockSpec((1, d_out_p), lambda i: (0, 0)),
            ],
            out_specs=pl.BlockSpec((block_b, d_out_p), lambda i: (i, 0)),
        ),
        compiler_params=pltpu.CompilerParams(
            dimension_semantics=("parallel",),
            vmem_limit_bytes=32 << 20,
        ),
        cost_estimate=cost,
    )(tok_pad, emb_pad, w_pad, bias_pad)

    return out[:B, :D_out]


def multimodal_forward(img_features, text_tokens,
                       img_w, img_b, emb_table, txt_w, txt_b, *, block_b=None):
    """Mirrors MultiModalModel.forward minus the frozen DINOv2 backbone:
    returns (image_proj(img_features), text_encoder(text_tokens))."""
    img_out = linear_l2_normalize(img_features, img_w, img_b, block_b=block_b)
    txt_out = text_encoder(text_tokens, emb_table, txt_w, txt_b, block_b=block_b)
    return img_out, txt_out


if __name__ == "__main__":
    # Small shapes consistent with the module: dinov2_vitb14 features are 768-d,
    # joint_dim = 128 (lane-dense), vocab = len(set('dogleopard')) + 1 = 9,
    # text_embed_dim = 64, short token sequences.
    B = 16
    IMG_FEAT_DIM = 768
    JOINT_DIM = 128
    VOCAB_SIZE = 9
    TEXT_EMBED_DIM = 64
    SEQ_LEN = 8

    key = jax.random.PRNGKey(0)
    ks = jax.random.split(key, 7)

    # TODO(synk): the frozen DINOv2 ViT-B/14 image encoder is not translated; we
    # start from its pooled [B, 768] features (it runs under torch.no_grad()).
    img_features = jax.random.normal(ks[0], (B, IMG_FEAT_DIM), dtype=jnp.float32)

    bi = 1.0 / (IMG_FEAT_DIM ** 0.5)
    img_w = jax.random.uniform(ks[1], (IMG_FEAT_DIM, JOINT_DIM), minval=-bi, maxval=bi,
                               dtype=jnp.float32)
    img_b = jax.random.uniform(ks[2], (JOINT_DIM,), minval=-bi, maxval=bi,
                               dtype=jnp.float32)

    text_tokens = jax.random.randint(ks[3], (B, SEQ_LEN), 0, VOCAB_SIZE, dtype=jnp.int32)
    emb_table = jax.random.normal(ks[4], (VOCAB_SIZE, TEXT_EMBED_DIM), dtype=jnp.float32)
    emb_table = emb_table.at[0].set(0.0)                     # padding_idx=0
    bt = 1.0 / (TEXT_EMBED_DIM ** 0.5)
    txt_w = jax.random.uniform(ks[5], (TEXT_EMBED_DIM, JOINT_DIM), minval=-bt, maxval=bt,
                               dtype=jnp.float32)
    txt_b = jax.random.uniform(ks[6], (JOINT_DIM,), minval=-bt, maxval=bt,
                               dtype=jnp.float32)

    # block_b=8 -> grid=(2,) on this tiny demo so the multi-step pipelined path runs.
    fwd = jax.jit(functools.partial(multimodal_forward, block_b=8))
    img_out, txt_out = fwd(img_features, text_tokens, img_w, img_b,
                           emb_table, txt_w, txt_b)
    jax.block_until_ready((img_out, txt_out))

    # Reference (plain JAX, same semantics as the PyTorch forward).
    def ref_norm(y):
        n = jnp.sqrt(jnp.sum(y * y, axis=-1, keepdims=True))
        return y / jnp.maximum(n, 1e-12)

    ref_img = ref_norm(img_features @ img_w + img_b)
    mean_emb = emb_table[text_tokens].mean(axis=1)
    ref_txt = ref_norm(mean_emb @ txt_w + txt_b)

    assert img_out.shape == (B, JOINT_DIM) and txt_out.shape == (B, JOINT_DIM)
    # Image branch uses bf16 MXU inputs (f32 accumulation) -> loose tolerance.
    assert jnp.allclose(img_out, ref_img, atol=1e-2, rtol=1e-2), "image branch mismatch"
    assert jnp.allclose(txt_out, ref_txt, atol=1e-2, rtol=1e-2), "text branch mismatch"

    print("KERNEL_OK")
</pallas_src>

<mosaic_0001>
module attributes {stable_mosaic.version = 11 : i64} {
  func.func @_linear_l2norm_kernel(%arg0: i32, %arg1: memref<8x768xbf16, #tpu.memory_space<vmem>>, %arg2: memref<768x128xbf16, #tpu.memory_space<vmem>>, %arg3: memref<1x128xf32, #tpu.memory_space<vmem>>, %arg4: memref<8x128xf32, #tpu.memory_space<vmem>>) attributes {dimension_semantics = [#tpu.dimension_semantics<parallel>], iteration_bounds = array<i64: 2>, scalar_prefetch = 0 : i64, scratch_operands = 0 : i64, tpu.core_type = #tpu.core_type<tc>, window_params = [{transform_indices = @transform_0, window_bounds = array<i64: 8, 768>}, {pipeline_mode = #tpu.pipeline_mode<synchronous>, transform_indices = @transform_1, window_bounds = array<i64: 768, 128>}, {pipeline_mode = #tpu.pipeline_mode<synchronous>, transform_indices = @transform_2, window_bounds = array<i64: 1, 128>}, {transform_indices = @transform_3, window_bounds = array<i64: 8, 128>}]} {
    %c0 = arith.constant 0 : index
    %c0_0 = arith.constant 0 : index
    %0 = vector.load %arg1[%c0, %c0_0] : memref<8x768xbf16, #tpu.memory_space<vmem>>, vector<8x768xbf16>
    %c0_1 = arith.constant 0 : index
    %c0_2 = arith.constant 0 : index
    %1 = vector.load %arg2[%c0_1, %c0_2] : memref<768x128xbf16, #tpu.memory_space<vmem>>, vector<768x128xbf16>
    %cst = arith.constant dense<0.000000e+00> : vector<8x128xf32>
    %2 = tpu.matmul %0, %1, %cst {dimension_numbers = #tpu.dot_dimension_numbers<[1], [0], [0], [1], [0, 0, 1, 1], [], []>} : vector<8x768xbf16>, vector<768x128xbf16>, vector<8x128xf32> -> vector<8x128xf32>
    %c0_3 = arith.constant 0 : index
    %c0_4 = arith.constant 0 : index
    %3 = vector.load %arg3[%c0_3, %c0_4] : memref<1x128xf32, #tpu.memory_space<vmem>>, vector<1x128xf32>
    %4 = vector.broadcast %3 : vector<1x128xf32> to vector<8x128xf32>
    %5 = arith.addf %2, %4 : vector<8x128xf32>
    %6 = arith.mulf %5, %5 : vector<8x128xf32>
    %cst_5 = arith.constant dense<0.000000e+00> : vector<8xf32>
    %7 = vector.multi_reduction <add>, %6, %cst_5 [1] : vector<8x128xf32> to vector<8xf32>
    %8 = vector.shape_cast %7 : vector<8xf32> to vector<8x1xf32>
    %cst_6 = arith.constant 1.000000e-24 : f32
    %9 = vector.broadcast %cst_6 : f32 to vector<8x1xf32>
    %10 = arith.maximumf %8, %9 : vector<8x1xf32>
    %11 = math.rsqrt %10 : vector<8x1xf32>
    %12 = vector.broadcast %11 : vector<8x1xf32> to vector<8x128xf32>
    %13 = arith.mulf %5, %12 : vector<8x128xf32>
    %c0_7 = arith.constant 0 : index
    %c0_8 = arith.constant 0 : index
    %14 = vector.load %arg4[%c0_7, %c0_8] : memref<8x128xf32, #tpu.memory_space<vmem>>, vector<8x128xf32>
    tpu.vector_store %arg4[%c0_7, %c0_8], %13 {strides = array<i32>} : memref<8x128xf32, #tpu.memory_space<vmem>>, vector<8x128xf32>,
    return
  }
  func.func @transform_0(%arg0: i32) -> (i32, i32) {
    %c0_i32 = arith.constant 0 : i32
    %c0_i32_0 = arith.constant 0 : i32
    return %arg0, %c0_i32 : i32, i32
  }
  func.func @transform_1(%arg0: i32) -> (i32, i32) {
    %c0_i32 = arith.constant 0 : i32
    %c0_i32_0 = arith.constant 0 : i32
    %c0_i32_1 = arith.constant 0 : i32
    return %c0_i32, %c0_i32_0 : i32, i32
  }
  func.func @transform_2(%arg0: i32) -> (i32, i32) {
    %c0_i32 = arith.constant 0 : i32
    %c0_i32_0 = arith.constant 0 : i32
    %c0_i32_1 = arith.constant 0 : i32
    return %c0_i32, %c0_i32_0 : i32, i32
  }
  func.func @transform_3(%arg0: i32) -> (i32, i32) {
    %c0_i32 = arith.constant 0 : i32
    %c0_i32_0 = arith.constant 0 : i32
    return %arg0, %c0_i32 : i32, i32
  }
}

module attributes {stable_mosaic.version = 11 : i64} {
  func.func @_text_encoder_kernel(%arg0: i32, %arg1: memref<8x8xi32, #tpu.memory_space<vmem>>, %arg2: memref<128x128xf32, #tpu.memory_space<vmem>>, %arg3: memref<128x128xf32, #tpu.memory_space<vmem>>, %arg4: memref<1x128xf32, #tpu.memory_space<vmem>>, %arg5: memref<8x128xf32, #tpu.memory_space<vmem>>) attributes {dimension_semantics = [#tpu.dimension_semantics<parallel>], iteration_bounds = array<i64: 2>, scalar_prefetch = 0 : i64, scratch_operands = 0 : i64, tpu.core_type = #tpu.core_type<tc>, window_params = [{transform_indices = @transform_0, window_bounds = array<i64: 8, 8>}, {pipeline_mode = #tpu.pipeline_mode<synchronous>, transform_indices = @transform_1, window_bounds = array<i64: 128, 128>}, {pipeline_mode = #tpu.pipeline_mode<synchronous>, transform_indices = @transform_2, window_bounds = array<i64: 128, 128>}, {pipeline_mode = #tpu.pipeline_mode<synchronous>, transform_indices = @transform_3, window_bounds = array<i64: 1, 128>}, {transform_indices = @transform_4, window_bounds = array<i64: 8, 128>}]} {
    %c0 = arith.constant 0 : index
    %c0_0 = arith.constant 0 : index
    %0 = vector.load %arg1[%c0, %c0_0] : memref<8x8xi32, #tpu.memory_space<vmem>>, vector<8x8xi32>
    %1 = tpu.iota {dimensions = array<i32: 1>} : vector<8x128xi32>
    %cst = arith.constant 0.000000e+00 : f32
    %2 = vector.broadcast %cst : f32 to vector<8x128xf32>
    %3 = vector.extract_strided_slice %0 {offsets = [0, 0], sizes = [8, 1], strides = [1, 1]} : vector<8x8xi32> to vector<8x1xi32>
    %4 = vector.broadcast %3 : vector<8x1xi32> to vector<8x128xi32>
    %5 = arith.cmpi eq, %4, %1 : vector<8x128xi32>
    %6 = arith.extui %5 : vector<8x128xi1> to vector<8x128xi32>
    %7 = arith.sitofp %6 : vector<8x128xi32> to vector<8x128xf32>
    %8 = arith.addf %2, %7 : vector<8x128xf32>
    %9 = vector.extract_strided_slice %0 {offsets = [0, 1], sizes = [8, 1], strides = [1, 1]} : vector<8x8xi32> to vector<8x1xi32>
    %10 = vector.broadcast %9 : vector<8x1xi32> to vector<8x128xi32>
    %11 = arith.cmpi eq, %10, %1 : vector<8x128xi32>
    %12 = arith.extui %11 : vector<8x128xi1> to vector<8x128xi32>
    %13 = arith.sitofp %12 : vector<8x128xi32> to vector<8x128xf32>
    %14 = arith.addf %8, %13 : vector<8x128xf32>
    %15 = vector.extract_strided_slice %0 {offsets = [0, 2], sizes = [8, 1], strides = [1, 1]} : vector<8x8xi32> to vector<8x1xi32>
    %16 = vector.broadcast %15 : vector<8x1xi32> to vector<8x128xi32>
    %17 = arith.cmpi eq, %16, %1 : vector<8x128xi32>
    %18 = arith.extui %17 : vector<8x128xi1> to vector<8x128xi32>
    %19 = arith.sitofp %18 : vector<8x128xi32> to vector<8x128xf32>
    %20 = arith.addf %14, %19 : vector<8x128xf32>
    %21 = vector.extract_strided_slice %0 {offsets = [0, 3], sizes = [8, 1], strides = [1, 1]} : vector<8x8xi32> to vector<8x1xi32>
    %22 = vector.broadcast %21 : vector<8x1xi32> to vector<8x128xi32>
    %23 = arith.cmpi eq, %22, %1 : vector<8x128xi32>
    %24 = arith.extui %23 : vector<8x128xi1> to vector<8x128xi32>
    %25 = arith.sitofp %24 : vector<8x128xi32> to vector<8x128xf32>
    %26 = arith.addf %20, %25 : vector<8x128xf32>
    %27 = vector.extract_strided_slice %0 {offsets = [0, 4], sizes = [8, 1], strides = [1, 1]} : vector<8x8xi32> to vector<8x1xi32>
    %28 = vector.broadcast %27 : vector<8x1xi32> to vector<8x128xi32>
    %29 = arith.cmpi eq, %28, %1 : vector<8x128xi32>
    %30 = arith.extui %29 : vector<8x128xi1> to vector<8x128xi32>
    %31 = arith.sitofp %30 : vector<8x128xi32> to vector<8x128xf32>
    %32 = arith.addf %26, %31 : vector<8x128xf32>
    %33 = vector.extract_strided_slice %0 {offsets = [0, 5], sizes = [8, 1], strides = [1, 1]} : vector<8x8xi32> to vector<8x1xi32>
    %34 = vector.broadcast %33 : vector<8x1xi32> to vector<8x128xi32>
    %35 = arith.cmpi eq, %34, %1 : vector<8x128xi32>
    %36 = arith.extui %35 : vector<8x128xi1> to vector<8x128xi32>
    %37 = arith.sitofp %36 : vector<8x128xi32> to vector<8x128xf32>
    %38 = arith.addf %32, %37 : vector<8x128xf32>
    %39 = vector.extract_strided_slice %0 {offsets = [0, 6], sizes = [8, 1], strides = [1, 1]} : vector<8x8xi32> to vector<8x1xi32>
    %40 = vector.broadcast %39 : vector<8x1xi32> to vector<8x128xi32>
    %41 = arith.cmpi eq, %40, %1 : vector<8x128xi32>
    %42 = arith.extui %41 : vector<8x128xi1> to vector<8x128xi32>
    %43 = arith.sitofp %42 : vector<8x128xi32> to vector<8x128xf32>
    %44 = arith.addf %38, %43 : vector<8x128xf32>
    %45 = vector.extract_strided_slice %0 {offsets = [0, 7], sizes = [8, 1], strides = [1, 1]} : vector<8x8xi32> to vector<8x1xi32>
    %46 = vector.broadcast %45 : vector<8x1xi32> to vector<8x128xi32>
    %47 = arith.cmpi eq, %46, %1 : vector<8x128xi32>
    %48 = arith.extui %47 : vector<8x128xi1> to vector<8x128xi32>
    %49 = arith.sitofp %48 : vector<8x128xi32> to vector<8x128xf32>
    %50 = arith.addf %44, %49 : vector<8x128xf32>
    %cst_1 = arith.constant 1.250000e-01 : f32
    %51 = vector.broadcast %cst_1 : f32 to vector<8x128xf32>
    %52 = arith.mulf %50, %51 : vector<8x128xf32>
    %c0_2 = arith.constant 0 : index
    %c0_3 = arith.constant 0 : index
    %53 = vector.load %arg2[%c0_2, %c0_3] : memref<128x128xf32, #tpu.memory_space<vmem>>, vector<128x128xf32>
    %cst_4 = arith.constant dense<0.000000e+00> : vector<8x128xf32>
    %54 = tpu.matmul %52, %53, %cst_4 {dimension_numbers = #tpu.dot_dimension_numbers<[1], [0], [0], [1], [0, 0, 1, 1], [], []>} : vector<8x128xf32>, vector<128x128xf32>, vector<8x128xf32> -> vector<8x128xf32>
    %c0_5 = arith.constant 0 : index
    %c0_6 = arith.constant 0 : index
    %55 = vector.load %arg3[%c0_5, %c0_6] : memref<128x128xf32, #tpu.memory_space<vmem>>, vector<128x128xf32>
    %cst_7 = arith.constant dense<0.000000e+00> : vector<8x128xf32>
    %56 = tpu.matmul %54, %55, %cst_7 {dimension_numbers = #tpu.dot_dimension_numbers<[1], [0], [0], [1], [0, 0, 1, 1], [], []>} : vector<8x128xf32>, vector<128x128xf32>, vector<8x128xf32> -> vector<8x128xf32>
    %c0_8 = arith.constant 0 : index
    %c0_9 = arith.constant 0 : index
    %57 = vector.load %arg4[%c0_8, %c0_9] : memref<1x128xf32, #tpu.memory_space<vmem>>, vector<1x128xf32>
    %58 = vector.broadcast %57 : vector<1x128xf32> to vector<8x128xf32>
    %59 = arith.addf %56, %58 : vector<8x128xf32>
    %60 = arith.mulf %59, %59 : vector<8x128xf32>
    %cst_10 = arith.constant dense<0.000000e+00> : vector<8xf32>
    %61 = vector.multi_reduction <add>, %60, %cst_10 [1] : vector<8x128xf32> to vector<8xf32>
    %62 = vector.shape_cast %61 : vector<8xf32> to vector<8x1xf32>
    %cst_11 = arith.constant 1.000000e-24 : f32
    %63 = vector.broadcast %cst_11 : f32 to vector<8x1xf32>
    %64 = arith.maximumf %62, %63 : vector<8x1xf32>
    %65 = math.rsqrt %64 : vector<8x1xf32>
    %66 = vector.broadcast %65 : vector<8x1xf32> to vector<8x128xf32>
    %67 = arith.mulf %59, %66 : vector<8x128xf32>
    %c0_12 = arith.constant 0 : index
    %c0_13 = arith.constant 0 : index
    %68 = vector.load %arg5[%c0_12, %c0_13] : memref<8x128xf32, #tpu.memory_space<vmem>>, vector<8x128xf32>
    tpu.vector_store %arg5[%c0_12, %c0_13], %67 {strides = array<i32>} : memref<8x128xf32, #tpu.memory_space<vmem>>, vector<8x128xf32>,
    return
  }
  func.func @transform_0(%arg0: i32) -> (i32, i32) {
    %c0_i32 = arith.constant 0 : i32
    %c0_i32_0 = arith.constant 0 : i32
    return %arg0, %c0_i32 : i32, i32
  }
  func.func @transform_1(%arg0: i32) -> (i32, i32) {
    %c0_i32 = arith.constant 0 : i32
    %c0_i32_0 = arith.constant 0 : i32
    %c0_i32_1 = arith.constant 0 : i32
    return %c0_i32, %c0_i32_0 : i32, i32
  }
  func.func @transform_2(%arg0: i32) -> (i32, i32) {
    %c0_i32 = arith.constant 0 : i32
    %c0_i32_0 = arith.constant 0 : i32
    %c0_i32_1 = arith.constant 0 : i32
    return %c0_i32, %c0_i32_0 : i32, i32
  }
  func.func @transform_3(%arg0: i32) -> (i32, i32) {
    %c0_i32 = arith.constant 0 : i32
    %c0_i32_0 = arith.constant 0 : i32
    %c0_i32_1 = arith.constant 0 : i32
    return %c0_i32, %c0_i32_0 : i32, i32
  }
  func.func @transform_4(%arg0: i32) -> (i32, i32) {
    %c0_i32 = arith.constant 0 : i32
    %c0_i32_0 = arith.constant 0 : i32
    return %arg0, %c0_i32 : i32, i32
  }
}

</mosaic_0001>

<llo_original>
// kernel: multimodal_forward.3
$region0: #{multimodal_forward.3}
  #allocation0 [shape = 'u32[]', space=smem, size = 0x4, offset = 0x4, fixed_abs, tag = 'smem constant byte address 0x4 - core index']
  #allocation1 [shape = 'u32[72,128]{1,0:T(1,128)}', space=vmem, size = 0x9000, scoped, tag = 'internal scratch']
  %s0 = inlined_call_operand.vmem [shape: s32[16,8], index: 0, kind: input, shape index: {}]
  %s1 = inlined_call_operand.vmem [shape: f32[128,128], index: 1, kind: input, shape index: {}]
  %s2 = inlined_call_operand.vmem [shape: f32[128,128], index: 2, kind: input, shape index: {}]
  %s3 = inlined_call_operand.vmem [shape: f32[1,128], index: 3, kind: input, shape index: {}]
  %s4 = inlined_call_operand.hbm [shape: f32[16,128], index: 4, kind: output, shape index: {}]
  %s5 = sld [smem:[#allocation0]]
  $region49: #{multimodal_forward.3} parent=0
    _
  %s7 = ssub.s32 1, %s5
  %s8 = scalar_select 0, %s7, %s5
  $region1: #{multimodal_forward.3} parent=0
    #allocation2 [shape = 'u8[8192]{0}', space=vmem, size = 0x2000, scoped, tag = 'output window, operand 0']
    #allocation3 [shape = 's32[2]{0}', space=sflag, size = 0x8, scoped, tag = 'scoped memory for multimodal_forward.3']
    %9 = vsyncpa [#allocation3], 0
    %s10 = scalar_lea.sflag [#allocation3], 1
    %11 = vsyncpa %s10, 0
    loop: start=0, step=1, limit=4
    $region2: #{multimodal_forward.3} parent=1 // loop_pre_header
      _
    $region3: #{multimodal_forward.3} parent=1 // loop_header
      %s13 = sphi 0, %s17
      %p14 = scmp.ge.s32.totalorder %s13, 4
      %s23 = sphi 0, %s25
      %s26 = sphi 0, %s23
      %s27 = sphi 0, %s26
      %s43 = sphi 0, %s27
      %s47 = sphi 0, %s47
      %s49 = sphi 0, %s47
      %s50 = sphi 0, %s49
      %s64 = sphi 0, %s50
      %s68 = sphi 0, %s68
      %s70 = sphi 0, %s68
      %s71 = sphi 0, %s70
      %s85 = sphi 0, %s71
      %s89 = sphi 0, %s89
      %s91 = sphi 0, %s89
      %s92 = sphi 0, %s91
      %s106 = sphi 0, %s92
      %s112 = sphi 0, %s114
      %s115 = sphi 0, %s112
      %s116 = sphi 0, %s115
      %s132 = sphi 0, %s116
    $region4: #{multimodal_forward.3} parent=1 // loop_header_branch
      %16 = sbr.rel (%p14) target = $region8
    $region5: #{multimodal_forward.3} parent=1 // loop_body
      %s18 = ssub.s32 %s13, 1
      %s19 = ssub.s32 %s13, 2
      %s20 = sadd.s32 %s13, 1
      %s21 = ssub.s32 %s13, %s20
      %p22 = scmp.eq.s32.totalorder %s21, 0
      %s24 = sadd.s32 %s23, 1
      %s25 = scalar_select %p22, %s23, %s24
      %p28 = pneg %p22
      %p29 = scmp.eq.s32.totalorder %s13, 1
      %p30 = por %p28, %p29
      %p31 = scmp.ne.s32.totalorder %s23, %s26
      %p32 = scmp.eq.s32.totalorder %s13, 0
      %p33 = por %p31, %p32
      %p34 = scmp.ne.s32.totalorder %s23, %s26
      %p35 = scmp.eq.s32.totalorder %s18, 1
      %p36 = por %p34, %p35
      %p37 = scmp.ne.s32.totalorder %s26, %s27
      %p38 = scmp.eq.s32.totalorder %s18, 0
      %p39 = por %p37, %p38
      %p40 = scmp.ne.s32.totalorder %s26, %s27
      %p41 = scmp.eq.s32.totalorder %s19, 1
      %p42 = por %p40, %p41
      %p44 = scmp.ne.s32.totalorder %s27, %s43
      %p45 = scmp.eq.s32.totalorder %s19, 0
      %p46 = por %p44, %p45
      %s48 = sadd.s32 %s47, 1
      %p51 = scmp.eq.s32.totalorder %s13, 1
      %p52 = scmp.ne.s32.totalorder %s47, %s49
      %p53 = scmp.eq.s32.totalorder %s13, 0
      %p54 = por %p52, %p53
      %p55 = scmp.ne.s32.totalorder %s47, %s49
      %p56 = scmp.eq.s32.totalorder %s18, 1
      %p57 = por %p55, %p56
      %p58 = scmp.ne.s32.totalorder %s49, %s50
      %p59 = scmp.eq.s32.totalorder %s18, 0
      %p60 = por %p58, %p59
      %p61 = scmp.ne.s32.totalorder %s49, %s50
      %p62 = scmp.eq.s32.totalorder %s19, 1
      %p63 = por %p61, %p62
      %p65 = scmp.ne.s32.totalorder %s50, %s64
      %p66 = scmp.eq.s32.totalorder %s19, 0
      %p67 = por %p65, %p66
      %s69 = sadd.s32 %s68, 1
      %p72 = scmp.eq.s32.totalorder %s13, 1
      %p73 = scmp.ne.s32.totalorder %s68, %s70
      %p74 = scmp.eq.s32.totalorder %s13, 0
      %p75 = por %p73, %p74
      %p76 = scmp.ne.s32.totalorder %s68, %s70
      %p77 = scmp.eq.s32.totalorder %s18, 1
      %p78 = por %p76, %p77
      %p79 = scmp.ne.s32.totalorder %s70, %s71
      %p80 = scmp.eq.s32.totalorder %s18, 0
      %p81 = por %p79, %p80
      %p82 = scmp.ne.s32.totalorder %s70, %s71
      %p83 = scmp.eq.s32.totalorder %s19, 1
      %p84 = por %p82, %p83
      %p86 = scmp.ne.s32.totalorder %s71, %s85
      %p87 = scmp.eq.s32.totalorder %s19, 0
      %p88 = por %p86, %p87
      %s90 = sadd.s32 %s89, 1
      %p93 = scmp.eq.s32.totalorder %s13, 1
      %p94 = scmp.ne.s32.totalorder %s89, %s91
      %p95 = scmp.eq.s32.totalorder %s13, 0
      %p96 = por %p94, %p95
      %p97 = scmp.ne.s32.totalorder %s89, %s91
      %p98 = scmp.eq.s32.totalorder %s18, 1
      %p99 = por %p97, %p98
      %p100 = scmp.ne.s32.totalorder %s91, %s92
      %p101 = scmp.eq.s32.totalorder %s18, 0
      %p102 = por %p100, %p101
      %p103 = scmp.ne.s32.totalorder %s91, %s92
      %p104 = scmp.eq.s32.totalorder %s19, 1
      %p105 = por %p103, %p104
      %p107 = scmp.ne.s32.totalorder %s92, %s106
      %p108 = scmp.eq.s32.totalorder %s19, 0
      %p109 = por %p107, %p108
      %s110 = ssub.s32 %s13, %s20
      %p111 = scmp.eq.s32.totalorder %s110, 0
      %s113 = sadd.s32 %s112, 1
      %s114 = scalar_select %p111, %s112, %s113
      %p117 = pneg %p111
      %p118 = scmp.eq.s32.totalorder %s13, 1
      %p119 = por %p117, %p118
      %p120 = scmp.ne.s32.totalorder %s112, %s115
      %p121 = scmp.eq.s32.totalorder %s13, 0
      %p122 = por %p120, %p121
      %p123 = scmp.ne.s32.totalorder %s112, %s115
      %p124 = scmp.eq.s32.totalorder %s18, 1
      %p125 = por %p123, %p124
      %p126 = scmp.ne.s32.totalorder %s115, %s116
      %p127 = scmp.eq.s32.totalorder %s18, 0
      %p128 = por %p126, %p127
      %p129 = scmp.ne.s32.totalorder %s115, %s116
      %p130 = scmp.eq.s32.totalorder %s19, 1
      %p131 = por %p129, %p130
      %p133 = scmp.ne.s32.totalorder %s116, %s132
      %p134 = scmp.eq.s32.totalorder %s19, 0
      %p135 = por %p133, %p134
      %p136 = scmp.le.s32.totalorder 1, %s13
      %p137 = scmp.lt.s32.totalorder %s13, 3
      %p138 = pnand %p136, %p137
      %p139 = pneg %p138
      // Predicated region
      $region9: #{multimodal_forward.3} parent=5 // pred_check
        _
      $region10: #{multimodal_forward.3} parent=5 // pred_check_branch
        %141 = sbr.rel (%p138) target = $region12
      $region11: #{multimodal_forward.3} parent=5 // pred_region
        %s142 = ssub.s32 %s13, 1
        // Predicated region
        $region13: #{multimodal_forward.3} parent=11 // pred_check
          %p143 = pneg %p60
        $region14: #{multimodal_forward.3} parent=11 // pred_check_branch
          %145 = sbr.rel (%p143) target = $region16
        $region15: #{multimodal_forward.3} parent=11 // pred_region
          _
        $region16: #{multimodal_forward.3} parent=11 // pred_fallthru
          _
        // Predicated region
        $region17: #{multimodal_forward.3} parent=11 // pred_check
          %p146 = pneg %p81
        $region18: #{multimodal_forward.3} parent=11 // pred_check_branch
          %148 = sbr.rel (%p146) target = $region20
        $region19: #{multimodal_forward.3} parent=11 // pred_region
          _
        $region20: #{multimodal_forward.3} parent=11 // pred_fallthru
          _
        // Predicated region
        $region21: #{multimodal_forward.3} parent=11 // pred_check
          %p149 = pneg %p102
        $region22: #{multimodal_forward.3} parent=11 // pred_check_branch
          %151 = sbr.rel (%p149) target = $region24
        $region23: #{multimodal_forward.3} parent=11 // pred_region
          _
        $region24: #{multimodal_forward.3} parent=11 // pred_fallthru
          _
      $region12: #{multimodal_forward.3} parent=5 // pred_fallthru
        _
      %p152 = scmp.lt.s32.totalorder %s13, 2
      // Predicated region
      $region25: #{multimodal_forward.3} parent=5 // pred_check
        %p153 = pneg %p152
      $region26: #{multimodal_forward.3} parent=5 // pred_check_branch
        %155 = sbr.rel (%p153) target = $region28
      $region27: #{multimodal_forward.3} parent=5 // pred_region
        // Predicated region
        $region29: #{multimodal_forward.3} parent=27 // pred_check
          %p156 = pneg %p33
        $region30: #{multimodal_forward.3} parent=27 // pred_check_branch
          %158 = sbr.rel (%p156) target = $region32
        $region31: #{multimodal_forward.3} parent=27 // pred_region
          %p159 = scmp.lt.s32.totalorder %s13, 1
          %s160 = scalar_select %p159, %s13, 1
          %s161 = smul.addr %s160, 8
          %s162 = scalar_lea.vmem %s0, %s161
        $region32: #{multimodal_forward.3} parent=27 // pred_fallthru
          _
      $region28: #{multimodal_forward.3} parent=5 // pred_fallthru
        _
      %p163 = scmp.le.s32.totalorder 1, %s13
      %p164 = scmp.lt.s32.totalorder %s13, 3
      %p165 = pnand %p163, %p164
      %p166 = pneg %p165
      // Predicated region
      $region33: #{multimodal_forward.3} parent=5 // pred_check
        _
      $region34: #{multimodal_forward.3} parent=5 // pred_check_branch
        %168 = sbr.rel (%p165) target = $region36
      $region35: #{multimodal_forward.3} parent=5 // pred_region
        %s169 = ssub.s32 %s13, 1
        %p170 = scmp.lt.s32.totalorder %s18, 1
        %s171 = scalar_select %p170, %s18, 1
        %s172 = smul.addr %s171, 8
        %s173 = scalar_lea.vmem %s0, %s172
        %p174 = pneg %p39
        %p175 = pneg %p36
        %p176 = pneg %p60
        %p177 = pneg %p57
        %p178 = pneg %p81
        %p179 = pneg %p78
        %p180 = pneg %p102
        %p181 = pneg %p99
        %p182 = pneg %p128
        %p183 = pneg %p125
        %s184 = sand.u32 %s115, 1
        %s185 = scalar_lea.sflag [#allocation3], %s184
        %s186 = sand.u32 %s115, 1
        %s187 = smul.addr %s186, 8
        %s188 = scalar_lea.vmem [#allocation2], %s187
        %p189 = scmp.lt.s32.totalorder %s18, 1
        %s190 = scalar_select %p189, %s18, 1
        %s191 = smul.addr %s190, 8
        %s192 = scalar_lea.vmem %s0, %s191
        %v193 = vld [vmem:[%s192] sm:$0xff]
        %v194 = vlaneseq
        %v195 = vand.u32 %v194, 127
        %196 = vset.pattern.permute.xlu0 0
        %197 = vperm.xlu0 %196, %v193
        %v198 = vpop.permute.xlu0 %197
        %vm199 = vcmp.eq.s32.totalorder %v198, %v195
        %v200 = vsel %vm199, 1, 0
        %v201 = vcvt.s32.f32 %v200
        %v202 = vadd.f32 %v201, 0.0
        %203 = vset.pattern.permute.xlu0 1
        %204 = vperm.xlu0 %203, %v193
        %v205 = vpop.permute.xlu0 %204
        %vm206 = vcmp.eq.s32.totalorder %v205, %v195
        %v207 = vsel %vm206, 1, 0
        %v208 = vcvt.s32.f32 %v207
        %v209 = vadd.f32 %v202, %v208
        %210 = vset.pattern.permute.xlu0 2
        %211 = vperm.xlu0 %210, %v193
        %v212 = vpop.permute.xlu0 %211
        %vm213 = vcmp.eq.s32.totalorder %v212, %v195
        %v214 = vsel %vm213, 1, 0
        %v215 = vcvt.s32.f32 %v214
        %v216 = vadd.f32 %v209, %v215
        %217 = vset.pattern.permute.xlu0 3
        %218 = vperm.xlu0 %217, %v193
        %v219 = vpop.permute.xlu0 %218
        %vm220 = vcmp.eq.s32.totalorder %v219, %v195
        %v221 = vsel %vm220, 1, 0
        %v222 = vcvt.s32.f32 %v221
        %v223 = vadd.f32 %v216, %v222
        %224 = vset.pattern.permute.xlu0 4
        %225 = vperm.xlu0 %224, %v193
        %v226 = vpop.permute.xlu0 %225
        %vm227 = vcmp.eq.s32.totalorder %v226, %v195
        %v228 = vsel %vm227, 1, 0
        %v229 = vcvt.s32.f32 %v228
        %v230 = vadd.f32 %v223, %v229
        %231 = vset.pattern.permute.xlu0 5
        %232 = vperm.xlu0 %231, %v193
        %v233 = vpop.permute.xlu0 %232
        %vm234 = vcmp.eq.s32.totalorder %v233, %v195
        %v235 = vsel %vm234, 1, 0
        %v236 = vcvt.s32.f32 %v235
        %v237 = vadd.f32 %v230, %v236
        %238 = vset.pattern.permute.xlu0 6
        %239 = vperm.xlu0 %238, %v193
        %v240 = vpop.permute.xlu0 %239
        %vm241 = vcmp.eq.s32.totalorder %v240, %v195
        %v242 = vsel %vm241, 1, 0
        %v243 = vcvt.s32.f32 %v242
        %v244 = vadd.f32 %v237, %v243
        %245 = vset.pattern.permute.xlu0 7
        %246 = vperm.xlu0 %245, %v193
        %v247 = vpop.permute.xlu0 %246
        %vm248 = vcmp.eq.s32.totalorder %v247, %v195
        %v249 = vsel %vm248, 1, 0
        %v250 = vcvt.s32.f32 %v249
        %v251 = vadd.f32 %v244, %v250
        %v252 = vmul.f32 %v251, 0.125
        %v253 = vld [vmem:[%s1] sm:$0xff]
        %v254 = vld [vmem:[%s1 + $0x8] sm:$0xff]
        %v255 = vld [vmem:[%s1 + $0x10] sm:$0xff]
        %v256 = vld [vmem:[%s1 + $0x18] sm:$0xff]
        %v257 = vld [vmem:[%s1 + $0x20] sm:$0xff]
        %v258 = vld [vmem:[%s1 + $0x28] sm:$0xff]
        %v259 = vld [vmem:[%s1 + $0x30] sm:$0xff]
        %v260 = vld [vmem:[%s1 + $0x38] sm:$0xff]
        %v261 = vld [vmem:[%s1 + $0x40] sm:$0xff]
        %v262 = vld [vmem:[%s1 + $0x48] sm:$0xff]
        %v263 = vld [vmem:[%s1 + $0x50] sm:$0xff]
        %v264 = vld [vmem:[%s1 + $0x58] sm:$0xff]
        %v265 = vld [vmem:[%s1 + $0x60] sm:$0xff]
        %v266 = vld [vmem:[%s1 + $0x68] sm:$0xff]
        %v267 = vld [vmem:[%s1 + $0x70] sm:$0xff]
        %v268 = vld [vmem:[%s1 + $0x78] sm:$0xff]
        %269 = vmatpush.msra.mxu0 %v268
        %270 = vmatpush.msra.mxu0 %v267
        %271 = vmatpush.msra.mxu0 %v266
        %272 = vmatpush.msra.mxu0 %v265
        %273 = vmatpush.msra.mxu0 %v264
        %274 = vmatpush.msra.mxu0 %v263
        %275 = vmatpush.msra.mxu0 %v262
        %276 = vmatpush.msra.mxu0 %v261
        %277 = vmatpush.msra.mxu0 %v260
        %278 = vmatpush.msra.mxu0 %v259
        %279 = vmatpush.msra.mxu0 %v258
        %280 = vmatpush.msra.mxu0 %v257
        %281 = vmatpush.msra.mxu0 %v256
        %282 = vmatpush.msra.mxu0 %v255
        %283 = vmatpush.msra.mxu0 %v254
        %284 = vmatpush.msra.mxu0 %v253
        %285 = vmatmul.f32.gmra.mxu0 %v252
        %v286 = vpop.f32.mrf.mxu0
        %v287 = vadd.f32 0.0, %v286
        %288 = vdwg.mxu0
        %v289 = vld [vmem:[%s2] sm:$0xff]
        %v290 = vld [vmem:[%s2 + $0x8] sm:$0xff]
        %v291 = vld [vmem:[%s2 + $0x10] sm:$0xff]
        %v292 = vld [vmem:[%s2 + $0x18] sm:$0xff]
        %v293 = vld [vmem:[%s2 + $0x20] sm:$0xff]
        %v294 = vld [vmem:[%s2 + $0x28] sm:$0xff]
        %v295 = vld [vmem:[%s2 + $0x30] sm:$0xff]
        %v296 = vld [vmem:[%s2 + $0x38] sm:$0xff]
        %v297 = vld [vmem:[%s2 + $0x40] sm:$0xff]
        %v298 = vld [vmem:[%s2 + $0x48] sm:$0xff]
        %v299 = vld [vmem:[%s2 + $0x50] sm:$0xff]
        %v300 = vld [vmem:[%s2 + $0x58] sm:$0xff]
        %v301 = vld [vmem:[%s2 + $0x60] sm:$0xff]
        %v302 = vld [vmem:[%s2 + $0x68] sm:$0xff]
        %v303 = vld [vmem:[%s2 + $0x70] sm:$0xff]
        %v304 = vld [vmem:[%s2 + $0x78] sm:$0xff]
        %v305 = vld [vmem:[%s3] sm:$0x1]
        %v307 = vperm.slane %v305, 0
        %309 = vmatpush.msra.mxu0 %v304
        %310 = vmatpush.msra.mxu0 %v303
        %311 = vmatpush.msra.mxu0 %v302
        %312 = vmatpush.msra.mxu0 %v301
        %313 = vmatpush.msra.mxu0 %v300
        %314 = vmatpush.msra.mxu0 %v299
        %315 = vmatpush.msra.mxu0 %v298
        %316 = vmatpush.msra.mxu0 %v297
        %317 = vmatpush.msra.mxu0 %v296
        %318 = vmatpush.msra.mxu0 %v295
        %319 = vmatpush.msra.mxu0 %v294
        %320 = vmatpush.msra.mxu0 %v293
        %321 = vmatpush.msra.mxu0 %v292
        %322 = vmatpush.msra.mxu0 %v291
        %323 = vmatpush.msra.mxu0 %v290
        %324 = vmatpush.msra.mxu0 %v289
        %325 = vmatmul.f32.gmra.mxu0 %v287
        %v326 = vpop.f32.mrf.mxu0
        %v327 = vadd.f32 %v307, %v326
        %328 = vdwg.mxu0
        %v329 = vmul.f32 %v327, %v327
        %330 = vadd.xlane.f32.xlu0 %v329
        %v331 = vpop.xlane.xlu0 %330
        %v332 = vmax.f32 %v331, 1e-24
        %v333 = vrsqrt.pop %v332
        %v334 = vmul.f32 %v333, %v332
        %v335 = vmul.f32 %v334, %v333
        %v336 = vmul.f32 0.5, %v335
        %v337 = vsub.f32 1.5, %v336
        %v338 = vmul.f32 %v333, %v337
        %vm339 = vweird.f32 %v332
        %vm340 = vweird.f32 %v333
        %vm341 = vmor %vm339, %vm340
        %v342 = vsel %vm341, %v333, %v338
        %v343 = vmul.f32 %v327, %v342
        %344 = vst [vmem:[%s188] sm:$0xff] %v343
        %s345 = sand.u32 %s115, 1
        %s346 = scalar_lea.sflag [#allocation3], %s345
        %s347 = sand.u32 %s115, 1
        %s348 = smul.addr %s347, 8
        %s349 = scalar_lea.vmem [#allocation2], %s348
        // Predicated region
        $region37: #{multimodal_forward.3} parent=35 // pred_check
          %p350 = pneg %p125
        $region38: #{multimodal_forward.3} parent=35 // pred_check_branch
          %352 = sbr.rel (%p350) target = $region40
        $region39: #{multimodal_forward.3} parent=35 // pred_region
          %354 = vsyncadd %s346, 0
          %s355 = smul.addr %s18, 8
          %s356 = scalar_lea.hbm %s4, %s355
          %s358 = sshll.u32 %s349, 4
          %s359 = int_to_ptr.vmem [resolvable:$true] %s358
          %s360 = sshll.u32 %s356, 4
          %s361 = int_to_ptr.hbm [resolvable:$true] %s360
          %363 = dma.vmem_to_hbm [thread:$0]  %s359, 128, %s361, %s346
        $region40: #{multimodal_forward.3} parent=35 // pred_fallthru
          _
      $region36: #{multimodal_forward.3} parent=5 // pred_fallthru
        _
      %p364 = scmp.le.s32.totalorder 2, %s13
      // Predicated region
      $region41: #{multimodal_forward.3} parent=5 // pred_check
        %p365 = pneg %p364
      $region42: #{multimodal_forward.3} parent=5 // pred_check_branch
        %367 = sbr.rel (%p365) target = $region44
      $region43: #{multimodal_forward.3} parent=5 // pred_region
        %s368 = ssub.s32 %s13, 2
        // Predicated region
        $region45: #{multimodal_forward.3} parent=43 // pred_check
          %p369 = pneg %p131
        $region46: #{multimodal_forward.3} parent=43 // pred_check_branch
          %371 = sbr.rel (%p369) target = $region48
        $region47: #{multimodal_forward.3} parent=43 // pred_region
          %s372 = sand.u32 %s116, 1
          %s373 = scalar_lea.sflag [#allocation3], %s372
          %s374 = sand.u32 %s116, 1
          %s375 = smul.addr %s374, 8
          %s376 = scalar_lea.vmem [#allocation2], %s375
          %378 = dma.done %s373, 128
        $region48: #{multimodal_forward.3} parent=43 // pred_fallthru
          _
      $region44: #{multimodal_forward.3} parent=5 // pred_fallthru
        _
    $region6: #{multimodal_forward.3} parent=1 // loop_footer
      %s17 = sadd.s32 1, %s13
    $region7: #{multimodal_forward.3} parent=1 // loop_footer_branch
      %12 = sbr.rel target = $region3
    $region8: #{multimodal_forward.3} parent=1 // loop_exit
      _
    %379 = vsyncpa [#allocation3], 1
    %s380 = scalar_lea.sflag [#allocation3], 1
    %381 = vsyncpa %s380, 1

// kernel: multimodal_forward.2
$region0: #{multimodal_forward.2}
  #allocation0 [shape = 'u32[]', space=smem, size = 0x4, offset = 0x4, fixed_abs, tag = 'smem constant byte address 0x4 - core index']
  #allocation1 [shape = 'u32[72,128]{1,0:T(1,128)}', space=vmem, size = 0x9000, scoped, tag = 'internal scratch']
  %s0 = inlined_call_operand.vmem [shape: bf16[16,768], index: 0, kind: input, shape index: {}]
  %s1 = inlined_call_operand.vmem [shape: bf16[768,128], index: 1, kind: input, shape index: {}]
  %s2 = inlined_call_operand.vmem [shape: f32[1,128], index: 2, kind: input, shape index: {}]
  %s3 = inlined_call_operand.hbm [shape: f32[16,128], index: 3, kind: output, shape index: {}]
  %s4 = sld [smem:[#allocation0]]
  $region45: #{multimodal_forward.2} parent=0
    _
  %s6 = ssub.s32 1, %s4
  %s7 = scalar_select 0, %s6, %s4
  $region1: #{multimodal_forward.2} parent=0
    #allocation2 [shape = 'u8[8192]{0}', space=vmem, size = 0x2000, scoped, tag = 'output window, operand 0']
    #allocation3 [shape = 's32[2]{0}', space=sflag, size = 0x8, scoped, tag = 'scoped memory for multimodal_forward.2']
    %8 = vsyncpa [#allocation3], 0
    %s9 = scalar_lea.sflag [#allocation3], 1
    %10 = vsyncpa %s9, 0
    loop: start=0, step=1, limit=4
    $region2: #{multimodal_forward.2} parent=1 // loop_pre_header
      _
    $region3: #{multimodal_forward.2} parent=1 // loop_header
      %s12 = sphi 0, %s16
      %p13 = scmp.ge.s32.totalorder %s12, 4
      %s22 = sphi 0, %s24
      %s25 = sphi 0, %s22
      %s26 = sphi 0, %s25
      %s42 = sphi 0, %s26
      %s46 = sphi 0, %s46
      %s48 = sphi 0, %s46
      %s49 = sphi 0, %s48
      %s63 = sphi 0, %s49
      %s67 = sphi 0, %s67
      %s69 = sphi 0, %s67
      %s70 = sphi 0, %s69
      %s84 = sphi 0, %s70
      %s90 = sphi 0, %s92
      %s93 = sphi 0, %s90
      %s94 = sphi 0, %s93
      %s110 = sphi 0, %s94
    $region4: #{multimodal_forward.2} parent=1 // loop_header_branch
      %15 = sbr.rel (%p13) target = $region8
    $region5: #{multimodal_forward.2} parent=1 // loop_body
      %s17 = ssub.s32 %s12, 1
      %s18 = ssub.s32 %s12, 2
      %s19 = sadd.s32 %s12, 1
      %s20 = ssub.s32 %s12, %s19
      %p21 = scmp.eq.s32.totalorder %s20, 0
      %s23 = sadd.s32 %s22, 1
      %s24 = scalar_select %p21, %s22, %s23
      %p27 = pneg %p21
      %p28 = scmp.eq.s32.totalorder %s12, 1
      %p29 = por %p27, %p28
      %p30 = scmp.ne.s32.totalorder %s22, %s25
      %p31 = scmp.eq.s32.totalorder %s12, 0
      %p32 = por %p30, %p31
      %p33 = scmp.ne.s32.totalorder %s22, %s25
      %p34 = scmp.eq.s32.totalorder %s17, 1
      %p35 = por %p33, %p34
      %p36 = scmp.ne.s32.totalorder %s25, %s26
      %p37 = scmp.eq.s32.totalorder %s17, 0
      %p38 = por %p36, %p37
      %p39 = scmp.ne.s32.totalorder %s25, %s26
      %p40 = scmp.eq.s32.totalorder %s18, 1
      %p41 = por %p39, %p40
      %p43 = scmp.ne.s32.totalorder %s26, %s42
      %p44 = scmp.eq.s32.totalorder %s18, 0
      %p45 = por %p43, %p44
      %s47 = sadd.s32 %s46, 1
      %p50 = scmp.eq.s32.totalorder %s12, 1
      %p51 = scmp.ne.s32.totalorder %s46, %s48
      %p52 = scmp.eq.s32.totalorder %s12, 0
      %p53 = por %p51, %p52
      %p54 = scmp.ne.s32.totalorder %s46, %s48
      %p55 = scmp.eq.s32.totalorder %s17, 1
      %p56 = por %p54, %p55
      %p57 = scmp.ne.s32.totalorder %s48, %s49
      %p58 = scmp.eq.s32.totalorder %s17, 0
      %p59 = por %p57, %p58
      %p60 = scmp.ne.s32.totalorder %s48, %s49
      %p61 = scmp.eq.s32.totalorder %s18, 1
      %p62 = por %p60, %p61
      %p64 = scmp.ne.s32.totalorder %s49, %s63
      %p65 = scmp.eq.s32.totalorder %s18, 0
      %p66 = por %p64, %p65
      %s68 = sadd.s32 %s67, 1
      %p71 = scmp.eq.s32.totalorder %s12, 1
      %p72 = scmp.ne.s32.totalorder %s67, %s69
      %p73 = scmp.eq.s32.totalorder %s12, 0
      %p74 = por %p72, %p73
      %p75 = scmp.ne.s32.totalorder %s67, %s69
      %p76 = scmp.eq.s32.totalorder %s17, 1
      %p77 = por %p75, %p76
      %p78 = scmp.ne.s32.totalorder %s69, %s70
      %p79 = scmp.eq.s32.totalorder %s17, 0
      %p80 = por %p78, %p79
      %p81 = scmp.ne.s32.totalorder %s69, %s70
      %p82 = scmp.eq.s32.totalorder %s18, 1
      %p83 = por %p81, %p82
      %p85 = scmp.ne.s32.totalorder %s70, %s84
      %p86 = scmp.eq.s32.totalorder %s18, 0
      %p87 = por %p85, %p86
      %s88 = ssub.s32 %s12, %s19
      %p89 = scmp.eq.s32.totalorder %s88, 0
      %s91 = sadd.s32 %s90, 1
      %s92 = scalar_select %p89, %s90, %s91
      %p95 = pneg %p89
      %p96 = scmp.eq.s32.totalorder %s12, 1
      %p97 = por %p95, %p96
      %p98 = scmp.ne.s32.totalorder %s90, %s93
      %p99 = scmp.eq.s32.totalorder %s12, 0
      %p100 = por %p98, %p99
      %p101 = scmp.ne.s32.totalorder %s90, %s93
      %p102 = scmp.eq.s32.totalorder %s17, 1
      %p103 = por %p101, %p102
      %p104 = scmp.ne.s32.totalorder %s93, %s94
      %p105 = scmp.eq.s32.totalorder %s17, 0
      %p106 = por %p104, %p105
      %p107 = scmp.ne.s32.totalorder %s93, %s94
      %p108 = scmp.eq.s32.totalorder %s18, 1
      %p109 = por %p107, %p108
      %p111 = scmp.ne.s32.totalorder %s94, %s110
      %p112 = scmp.eq.s32.totalorder %s18, 0
      %p113 = por %p111, %p112
      %p114 = scmp.le.s32.totalorder 1, %s12
      %p115 = scmp.lt.s32.totalorder %s12, 3
      %p116 = pnand %p114, %p115
      %p117 = pneg %p116
      // Predicated region
      $region9: #{multimodal_forward.2} parent=5 // pred_check
        _
      $region10: #{multimodal_forward.2} parent=5 // pred_check_branch
        %119 = sbr.rel (%p116) target = $region12
      $region11: #{multimodal_forward.2} parent=5 // pred_region
        %s120 = ssub.s32 %s12, 1
        // Predicated region
        $region13: #{multimodal_forward.2} parent=11 // pred_check
          %p121 = pneg %p59
        $region14: #{multimodal_forward.2} parent=11 // pred_check_branch
          %123 = sbr.rel (%p121) target = $region16
        $region15: #{multimodal_forward.2} parent=11 // pred_region
          _
        $region16: #{multimodal_forward.2} parent=11 // pred_fallthru
          _
        // Predicated region
        $region17: #{multimodal_forward.2} parent=11 // pred_check
          %p124 = pneg %p80
        $region18: #{multimodal_forward.2} parent=11 // pred_check_branch
          %126 = sbr.rel (%p124) target = $region20
        $region19: #{multimodal_forward.2} parent=11 // pred_region
          _
        $region20: #{multimodal_forward.2} parent=11 // pred_fallthru
          _
      $region12: #{multimodal_forward.2} parent=5 // pred_fallthru
        _
      %p127 = scmp.lt.s32.totalorder %s12, 2
      // Predicated region
      $region21: #{multimodal_forward.2} parent=5 // pred_check
        %p128 = pneg %p127
      $region22: #{multimodal_forward.2} parent=5 // pred_check_branch
        %130 = sbr.rel (%p128) target = $region24
      $region23: #{multimodal_forward.2} parent=5 // pred_region
        // Predicated region
        $region25: #{multimodal_forward.2} parent=23 // pred_check
          %p131 = pneg %p32
        $region26: #{multimodal_forward.2} parent=23 // pred_check_branch
          %133 = sbr.rel (%p131) target = $region28
        $region27: #{multimodal_forward.2} parent=23 // pred_region
          %p134 = scmp.lt.s32.totalorder %s12, 1
          %s135 = scalar_select %p134, %s12, 1
          %s136 = smul.addr %s135, 6
          %s137 = smul.addr %s136, 4
          %s138 = scalar_lea.vmem %s0, %s137
        $region28: #{multimodal_forward.2} parent=23 // pred_fallthru
          _
      $region24: #{multimodal_forward.2} parent=5 // pred_fallthru
        _
      %p139 = scmp.le.s32.totalorder 1, %s12
      %p140 = scmp.lt.s32.totalorder %s12, 3
      %p141 = pnand %p139, %p140
      %p142 = pneg %p141
      // Predicated region
      $region29: #{multimodal_forward.2} parent=5 // pred_check
        _
      $region30: #{multimodal_forward.2} parent=5 // pred_check_branch
        %144 = sbr.rel (%p141) target = $region32
      $region31: #{multimodal_forward.2} parent=5 // pred_region
        %s145 = ssub.s32 %s12, 1
        %p146 = scmp.lt.s32.totalorder %s17, 1
        %s147 = scalar_select %p146, %s17, 1
        %s148 = smul.addr %s147, 6
        %s149 = smul.addr %s148, 4
        %s150 = scalar_lea.vmem %s0, %s149
        %p151 = pneg %p38
        %p152 = pneg %p35
        %p153 = pneg %p59
        %p154 = pneg %p56
        %p155 = pneg %p80
        %p156 = pneg %p77
        %p157 = pneg %p106
        %p158 = pneg %p103
        %s159 = sand.u32 %s93, 1
        %s160 = scalar_lea.sflag [#allocation3], %s159
        %s161 = sand.u32 %s93, 1
        %s162 = smul.addr %s161, 8
        %s163 = scalar_lea.vmem [#allocation2], %s162
        %p164 = scmp.lt.s32.totalorder %s17, 1
        %s165 = scalar_select %p164, %s17, 1
        %s166 = smul.addr %s165, 6
        %s167 = smul.addr %s166, 4
        %s168 = scalar_lea.vmem %s0, %s167
        %v169 = vld [vmem:[%s168] sm:$0xff]
        %v170 = vld [vmem:[%s168 + $0x8] sm:$0xff]
        %v171 = vld [vmem:[%s168 + $0x10] sm:$0xff]
        %v172 = vld [vmem:[%s1] sm:$0xf]
        %v173 = vld [vmem:[%s1 + $0x4] sm:$0xf]
        %v174 = vld [vmem:[%s1 + $0x8] sm:$0xf]
        %v175 = vld [vmem:[%s1 + $0xc] sm:$0xf]
        %v176 = vld [vmem:[%s1 + $0x10] sm:$0xf]
        %v177 = vld [vmem:[%s1 + $0x14] sm:$0xf]
        %v178 = vld [vmem:[%s1 + $0x18] sm:$0xf]
        %v179 = vld [vmem:[%s1 + $0x1c] sm:$0xf]
        %v180 = vld [vmem:[%s1 + $0x20] sm:$0xf]
        %v181 = vld [vmem:[%s1 + $0x24] sm:$0xf]
        %v182 = vld [vmem:[%s1 + $0x28] sm:$0xf]
        %v183 = vld [vmem:[%s1 + $0x2c] sm:$0xf]
        %v184 = vld [vmem:[%s1 + $0x30] sm:$0xf]
        %v185 = vld [vmem:[%s1 + $0x34] sm:$0xf]
        %v186 = vld [vmem:[%s1 + $0x38] sm:$0xf]
        %v187 = vld [vmem:[%s1 + $0x3c] sm:$0xf]
        %v188 = vld [vmem:[%s1 + $0x40] sm:$0xf]
        %v189 = vld [vmem:[%s1 + $0x44] sm:$0xf]
        %v190 = vld [vmem:[%s1 + $0x48] sm:$0xf]
        %v191 = vld [vmem:[%s1 + $0x4c] sm:$0xf]
        %v192 = vld [vmem:[%s1 + $0x50] sm:$0xf]
        %v193 = vld [vmem:[%s1 + $0x54] sm:$0xf]
        %v194 = vld [vmem:[%s1 + $0x58] sm:$0xf]
        %v195 = vld [vmem:[%s1 + $0x5c] sm:$0xf]
        %v196 = vld [vmem:[%s1 + $0x60] sm:$0xf]
        %v197 = vld [vmem:[%s1 + $0x64] sm:$0xf]
        %v198 = vld [vmem:[%s1 + $0x68] sm:$0xf]
        %v199 = vld [vmem:[%s1 + $0x6c] sm:$0xf]
        %v200 = vld [vmem:[%s1 + $0x70] sm:$0xf]
        %v201 = vld [vmem:[%s1 + $0x74] sm:$0xf]
        %v202 = vld [vmem:[%s1 + $0x78] sm:$0xf]
        %v203 = vld [vmem:[%s1 + $0x7c] sm:$0xf]
        %v204 = vld [vmem:[%s1 + $0x80] sm:$0xf]
        %v205 = vld [vmem:[%s1 + $0x84] sm:$0xf]
        %v206 = vld [vmem:[%s1 + $0x88] sm:$0xf]
        %v207 = vld [vmem:[%s1 + $0x8c] sm:$0xf]
        %v208 = vld [vmem:[%s1 + $0x90] sm:$0xf]
        %v209 = vld [vmem:[%s1 + $0x94] sm:$0xf]
        %v210 = vld [vmem:[%s1 + $0x98] sm:$0xf]
        %v211 = vld [vmem:[%s1 + $0x9c] sm:$0xf]
        %v212 = vld [vmem:[%s1 + $0xa0] sm:$0xf]
        %v213 = vld [vmem:[%s1 + $0xa4] sm:$0xf]
        %v214 = vld [vmem:[%s1 + $0xa8] sm:$0xf]
        %v215 = vld [vmem:[%s1 + $0xac] sm:$0xf]
        %v216 = vld [vmem:[%s1 + $0xb0] sm:$0xf]
        %v217 = vld [vmem:[%s1 + $0xb4] sm:$0xf]
        %v218 = vld [vmem:[%s1 + $0xb8] sm:$0xf]
        %v219 = vld [vmem:[%s1 + $0xbc] sm:$0xf]
        %v220 = vld [vmem:[%s1 + $0xc0] sm:$0xf]
        %v221 = vld [vmem:[%s1 + $0xc4] sm:$0xf]
        %v222 = vld [vmem:[%s1 + $0xc8] sm:$0xf]
        %v223 = vld [vmem:[%s1 + $0xcc] sm:$0xf]
        %v224 = vld [vmem:[%s1 + $0xd0] sm:$0xf]
        %v225 = vld [vmem:[%s1 + $0xd4] sm:$0xf]
        %v226 = vld [vmem:[%s1 + $0xd8] sm:$0xf]
        %v227 = vld [vmem:[%s1 + $0xdc] sm:$0xf]
        %v228 = vld [vmem:[%s1 + $0xe0] sm:$0xf]
        %v229 = vld [vmem:[%s1 + $0xe4] sm:$0xf]
        %v230 = vld [vmem:[%s1 + $0xe8] sm:$0xf]
        %v231 = vld [vmem:[%s1 + $0xec] sm:$0xf]
        %v232 = vld [vmem:[%s1 + $0xf0] sm:$0xf]
        %v233 = vld [vmem:[%s1 + $0xf4] sm:$0xf]
        %v234 = vld [vmem:[%s1 + $0xf8] sm:$0xf]
        %v235 = vld [vmem:[%s1 + $0xfc] sm:$0xf]
        %v236 = vld [vmem:[%s1 + $0x100] sm:$0xf]
        %v237 = vld [vmem:[%s1 + $0x104] sm:$0xf]
        %v238 = vld [vmem:[%s1 + $0x108] sm:$0xf]
        %v239 = vld [vmem:[%s1 + $0x10c] sm:$0xf]
        %v240 = vld [vmem:[%s1 + $0x110] sm:$0xf]
        %v241 = vld [vmem:[%s1 + $0x114] sm:$0xf]
        %v242 = vld [vmem:[%s1 + $0x118] sm:$0xf]
        %v243 = vld [vmem:[%s1 + $0x11c] sm:$0xf]
        %v244 = vld [vmem:[%s1 + $0x120] sm:$0xf]
        %v245 = vld [vmem:[%s1 + $0x124] sm:$0xf]
        %v246 = vld [vmem:[%s1 + $0x128] sm:$0xf]
        %v247 = vld [vmem:[%s1 + $0x12c] sm:$0xf]
        %v248 = vld [vmem:[%s1 + $0x130] sm:$0xf]
        %v249 = vld [vmem:[%s1 + $0x134] sm:$0xf]
        %v250 = vld [vmem:[%s1 + $0x138] sm:$0xf]
        %v251 = vld [vmem:[%s1 + $0x13c] sm:$0xf]
        %v252 = vld [vmem:[%s1 + $0x140] sm:$0xf]
        %v253 = vld [vmem:[%s1 + $0x144] sm:$0xf]
        %v254 = vld [vmem:[%s1 + $0x148] sm:$0xf]
        %v255 = vld [vmem:[%s1 + $0x14c] sm:$0xf]
        %v256 = vld [vmem:[%s1 + $0x150] sm:$0xf]
        %v257 = vld [vmem:[%s1 + $0x154] sm:$0xf]
        %v258 = vld [vmem:[%s1 + $0x158] sm:$0xf]
        %v259 = vld [vmem:[%s1 + $0x15c] sm:$0xf]
        %v260 = vld [vmem:[%s1 + $0x160] sm:$0xf]
        %v261 = vld [vmem:[%s1 + $0x164] sm:$0xf]
        %v262 = vld [vmem:[%s1 + $0x168] sm:$0xf]
        %v263 = vld [vmem:[%s1 + $0x16c] sm:$0xf]
        %v264 = vld [vmem:[%s1 + $0x170] sm:$0xf]
        %v265 = vld [vmem:[%s1 + $0x174] sm:$0xf]
        %v266 = vld [vmem:[%s1 + $0x178] sm:$0xf]
        %v267 = vld [vmem:[%s1 + $0x17c] sm:$0xf]
        %v268 = vld [vmem:[%s2] sm:$0x1]
        %v270 = vperm.slane %v268, 0
        %v275 = vunpack.c.l.b16 %v169
        %v276 = vunpack.c.h.b16 %v169
        %v277 = vunpack.c.l.b16 %v170
        %v278 = vunpack.c.h.b16 %v170
        %v279 = vunpack.c.l.b16 %v171
        %v280 = vunpack.c.h.b16 %v171
        %v281 = vpack.c.b16 %v275, %v275
        %v282 = vpack.c.b16 %v276, %v276
        %v283 = vpack.c.b16 %v277, %v277
        %v284 = vpack.c.b16 %v278, %v278
        %v285 = vpack.c.b16 %v279, %v279
        %v286 = vpack.c.b16 %v280, %v280
        %v389 = vunpack.c.l.b16 %v172
        %v390 = vunpack.c.l.b16 %v173
        %v391 = vunpack.c.l.b16 %v174
        %v392 = vunpack.c.l.b16 %v175
        %v393 = vunpack.c.l.b16 %v176
        %v394 = vunpack.c.l.b16 %v177
        %v395 = vunpack.c.l.b16 %v178
        %v396 = vunpack.c.l.b16 %v179
        %v397 = vunpack.c.l.b16 %v180
        %v398 = vunpack.c.l.b16 %v181
        %v399 = vunpack.c.l.b16 %v182
        %v400 = vunpack.c.l.b16 %v183
        %v401 = vunpack.c.l.b16 %v184
        %v402 = vunpack.c.l.b16 %v185
        %v403 = vunpack.c.l.b16 %v186
        %v404 = vunpack.c.l.b16 %v187
        %v405 = vunpack.c.l.b16 %v188
        %v406 = vunpack.c.l.b16 %v189
        %v407 = vunpack.c.l.b16 %v190
        %v408 = vunpack.c.l.b16 %v191
        %v409 = vunpack.c.l.b16 %v192
        %v410 = vunpack.c.l.b16 %v193
        %v411 = vunpack.c.l.b16 %v194
        %v412 = vunpack.c.l.b16 %v195
        %v413 = vunpack.c.l.b16 %v196
        %v414 = vunpack.c.l.b16 %v197
        %v415 = vunpack.c.l.b16 %v198
        %v416 = vunpack.c.l.b16 %v199
        %v417 = vunpack.c.l.b16 %v200
        %v418 = vunpack.c.l.b16 %v201
        %v419 = vunpack.c.l.b16 %v202
        %v420 = vunpack.c.l.b16 %v203
        %v421 = vunpack.c.l.b16 %v204
        %v422 = vunpack.c.l.b16 %v205
        %v423 = vunpack.c.l.b16 %v206
        %v424 = vunpack.c.l.b16 %v207
        %v425 = vunpack.c.l.b16 %v208
        %v426 = vunpack.c.l.b16 %v209
        %v427 = vunpack.c.l.b16 %v210
        %v428 = vunpack.c.l.b16 %v211
        %v429 = vunpack.c.l.b16 %v212
        %v430 = vunpack.c.l.b16 %v213
        %v431 = vunpack.c.l.b16 %v214
        %v432 = vunpack.c.l.b16 %v215
        %v433 = vunpack.c.l.b16 %v216
        %v434 = vunpack.c.l.b16 %v217
        %v435 = vunpack.c.l.b16 %v218
        %v436 = vunpack.c.l.b16 %v219
        %v437 = vunpack.c.l.b16 %v220
        %v438 = vunpack.c.l.b16 %v221
        %v439 = vunpack.c.l.b16 %v222
        %v440 = vunpack.c.l.b16 %v223
        %v441 = vunpack.c.l.b16 %v224
        %v442 = vunpack.c.l.b16 %v225
        %v443 = vunpack.c.l.b16 %v226
        %v444 = vunpack.c.l.b16 %v227
        %v445 = vunpack.c.l.b16 %v228
        %v446 = vunpack.c.l.b16 %v229
        %v447 = vunpack.c.l.b16 %v230
        %v448 = vunpack.c.l.b16 %v231
        %v449 = vunpack.c.l.b16 %v232
        %v450 = vunpack.c.l.b16 %v233
        %v451 = vunpack.c.l.b16 %v234
        %v452 = vunpack.c.l.b16 %v235
        %v453 = vunpack.c.l.b16 %v236
        %v454 = vunpack.c.l.b16 %v237
        %v455 = vunpack.c.l.b16 %v238
        %v456 = vunpack.c.l.b16 %v239
        %v457 = vunpack.c.l.b16 %v240
        %v458 = vunpack.c.l.b16 %v241
        %v459 = vunpack.c.l.b16 %v242
        %v460 = vunpack.c.l.b16 %v243
        %v461 = vunpack.c.l.b16 %v244
        %v462 = vunpack.c.l.b16 %v245
        %v463 = vunpack.c.l.b16 %v246
        %v464 = vunpack.c.l.b16 %v247
        %v465 = vunpack.c.l.b16 %v248
        %v466 = vunpack.c.l.b16 %v249
        %v467 = vunpack.c.l.b16 %v250
        %v468 = vunpack.c.l.b16 %v251
        %v469 = vunpack.c.l.b16 %v252
        %v470 = vunpack.c.l.b16 %v253
        %v471 = vunpack.c.l.b16 %v254
        %v472 = vunpack.c.l.b16 %v255
        %v473 = vunpack.c.l.b16 %v256
        %v474 = vunpack.c.l.b16 %v257
        %v475 = vunpack.c.l.b16 %v258
        %v476 = vunpack.c.l.b16 %v259
        %v477 = vunpack.c.l.b16 %v260
        %v478 = vunpack.c.l.b16 %v261
        %v479 = vunpack.c.l.b16 %v262
        %v480 = vunpack.c.l.b16 %v263
        %v481 = vunpack.c.l.b16 %v264
        %v482 = vunpack.c.l.b16 %v265
        %v483 = vunpack.c.l.b16 %v266
        %v484 = vunpack.c.l.b16 %v267
        %v485 = vpack.c.b16 %v390, %v389
        %v486 = vpack.c.b16 %v392, %v391
        %v487 = vpack.c.b16 %v394, %v393
        %v488 = vpack.c.b16 %v396, %v395
        %v489 = vpack.c.b16 %v398, %v397
        %v490 = vpack.c.b16 %v400, %v399
        %v491 = vpack.c.b16 %v402, %v401
        %v492 = vpack.c.b16 %v404, %v403
        %v493 = vpack.c.b16 %v406, %v405
        %v494 = vpack.c.b16 %v408, %v407
        %v495 = vpack.c.b16 %v410, %v409
        %v496 = vpack.c.b16 %v412, %v411
        %v497 = vpack.c.b16 %v414, %v413
        %v498 = vpack.c.b16 %v416, %v415
        %v499 = vpack.c.b16 %v418, %v417
        %v500 = vpack.c.b16 %v420, %v419
        %v501 = vpack.c.b16 %v422, %v421
        %v502 = vpack.c.b16 %v424, %v423
        %v503 = vpack.c.b16 %v426, %v425
        %v504 = vpack.c.b16 %v428, %v427
        %v505 = vpack.c.b16 %v430, %v429
        %v506 = vpack.c.b16 %v432, %v431
        %v507 = vpack.c.b16 %v434, %v433
        %v508 = vpack.c.b16 %v436, %v435
        %v509 = vpack.c.b16 %v438, %v437
        %v510 = vpack.c.b16 %v440, %v439
        %v511 = vpack.c.b16 %v442, %v441
        %v512 = vpack.c.b16 %v444, %v443
        %v513 = vpack.c.b16 %v446, %v445
        %v514 = vpack.c.b16 %v448, %v447
        %v515 = vpack.c.b16 %v450, %v449
        %v516 = vpack.c.b16 %v452, %v451
        %v517 = vpack.c.b16 %v454, %v453
        %v518 = vpack.c.b16 %v456, %v455
        %v519 = vpack.c.b16 %v458, %v457
        %v520 = vpack.c.b16 %v460, %v459
        %v521 = vpack.c.b16 %v462, %v461
        %v522 = vpack.c.b16 %v464, %v463
        %v523 = vpack.c.b16 %v466, %v465
        %v524 = vpack.c.b16 %v468, %v467
        %v525 = vpack.c.b16 %v470, %v469
        %v526 = vpack.c.b16 %v472, %v471
        %v527 = vpack.c.b16 %v474, %v473
        %v528 = vpack.c.b16 %v476, %v475
        %v529 = vpack.c.b16 %v478, %v477
        %v530 = vpack.c.b16 %v480, %v479
        %v531 = vpack.c.b16 %v482, %v481
        %v532 = vpack.c.b16 %v484, %v483
        %581 = vmatpush.bf16.msra.mxu0 %v492
        %582 = vmatpush.bf16.msra.mxu0 %v491
        %583 = vmatpush.bf16.msra.mxu0 %v490
        %584 = vmatpush.bf16.msra.mxu0 %v489
        %585 = vmatpush.bf16.msra.mxu0 %v488
        %586 = vmatpush.bf16.msra.mxu0 %v487
        %587 = vmatpush.bf16.msra.mxu0 %v486
        %588 = vmatpush.bf16.msra.mxu0 %v485
        %589 = vmatmul.bf16.gmra.mxu0 %v281
        %v590 = vpop.f32.mrf.mxu0
        %v591 = vadd.f32 %v270, %v590
        %v592 = vpop.f32.mrf.mxu0
        %593 = vdwg.mxu0
        %594 = vmatpush.bf16.msra.mxu0 %v500
        %595 = vmatpush.bf16.msra.mxu0 %v499
        %596 = vmatpush.bf16.msra.mxu0 %v498
        %597 = vmatpush.bf16.msra.mxu0 %v497
        %598 = vmatpush.bf16.msra.mxu0 %v496
        %599 = vmatpush.bf16.msra.mxu0 %v495
        %600 = vmatpush.bf16.msra.mxu0 %v494
        %601 = vmatpush.bf16.msra.mxu0 %v493
        %602 = vmatmul.bf16.gmra.mxu0 %v282
        %v603 = vpop.f32.mrf.mxu0
        %v604 = vadd.f32 %v591, %v603
        %v605 = vpop.f32.mrf.mxu0
        %606 = vdwg.mxu0
        %607 = vmatpush.bf16.msra.mxu0 %v508
        %608 = vmatpush.bf16.msra.mxu0 %v507
        %609 = vmatpush.bf16.msra.mxu0 %v506
        %610 = vmatpush.bf16.msra.mxu0 %v505
        %611 = vmatpush.bf16.msra.mxu0 %v504
        %612 = vmatpush.bf16.msra.mxu0 %v503
        %613 = vmatpush.bf16.msra.mxu0 %v502
        %614 = vmatpush.bf16.msra.mxu0 %v501
        %615 = vmatmul.bf16.gmra.mxu0 %v283
        %v616 = vpop.f32.mrf.mxu0
        %v617 = vadd.f32 %v604, %v616
        %v618 = vpop.f32.mrf.mxu0
        %619 = vdwg.mxu0
        %620 = vmatpush.bf16.msra.mxu0 %v516
        %621 = vmatpush.bf16.msra.mxu0 %v515
        %622 = vmatpush.bf16.msra.mxu0 %v514
        %623 = vmatpush.bf16.msra.mxu0 %v513
        %624 = vmatpush.bf16.msra.mxu0 %v512
        %625 = vmatpush.bf16.msra.mxu0 %v511
        %626 = vmatpush.bf16.msra.mxu0 %v510
        %627 = vmatpush.bf16.msra.mxu0 %v509
        %628 = vmatmul.bf16.gmra.mxu0 %v284
        %v629 = vpop.f32.mrf.mxu0
        %v630 = vadd.f32 %v617, %v629
        %v631 = vpop.f32.mrf.mxu0
        %632 = vdwg.mxu0
        %633 = vmatpush.bf16.msra.mxu0 %v524
        %634 = vmatpush.bf16.msra.mxu0 %v523
        %635 = vmatpush.bf16.msra.mxu0 %v522
        %636 = vmatpush.bf16.msra.mxu0 %v521
        %637 = vmatpush.bf16.msra.mxu0 %v520
        %638 = vmatpush.bf16.msra.mxu0 %v519
        %639 = vmatpush.bf16.msra.mxu0 %v518
        %640 = vmatpush.bf16.msra.mxu0 %v517
        %641 = vmatmul.bf16.gmra.mxu0 %v285
        %v642 = vpop.f32.mrf.mxu0
        %v643 = vadd.f32 %v630, %v642
        %v644 = vpop.f32.mrf.mxu0
        %645 = vdwg.mxu0
        %646 = vmatpush.bf16.msra.mxu0 %v532
        %647 = vmatpush.bf16.msra.mxu0 %v531
        %648 = vmatpush.bf16.msra.mxu0 %v530
        %649 = vmatpush.bf16.msra.mxu0 %v529
        %650 = vmatpush.bf16.msra.mxu0 %v528
        %651 = vmatpush.bf16.msra.mxu0 %v527
        %652 = vmatpush.bf16.msra.mxu0 %v526
        %653 = vmatpush.bf16.msra.mxu0 %v525
        %654 = vmatmul.bf16.gmra.mxu0 %v286
        %v655 = vpop.f32.mrf.mxu0
        %v656 = vadd.f32 %v643, %v655
        %v657 = vpop.f32.mrf.mxu0
        %658 = vdwg.mxu0
        %v659 = vmul.f32 %v656, %v656
        %660 = vadd.xlane.f32.xlu0 %v659
        %v661 = vpop.xlane.xlu0 %660
        %v662 = vmax.f32 %v661, 1e-24
        %v663 = vrsqrt.pop %v662
        %v664 = vmul.f32 %v663, %v662
        %v665 = vmul.f32 %v664, %v663
        %v666 = vmul.f32 0.5, %v665
        %v667 = vsub.f32 1.5, %v666
        %v668 = vmul.f32 %v663, %v667
        %vm669 = vweird.f32 %v662
        %vm670 = vweird.f32 %v663
        %vm671 = vmor %vm669, %vm670
        %v672 = vsel %vm671, %v663, %v668
        %v673 = vmul.f32 %v656, %v672
        %674 = vst [vmem:[%s163] sm:$0xff] %v673
        %s675 = sand.u32 %s93, 1
        %s676 = scalar_lea.sflag [#allocation3], %s675
        %s677 = sand.u32 %s93, 1
        %s678 = smul.addr %s677, 8
        %s679 = scalar_lea.vmem [#allocation2], %s678
        // Predicated region
        $region33: #{multimodal_forward.2} parent=31 // pred_check
          %p680 = pneg %p103
        $region34: #{multimodal_forward.2} parent=31 // pred_check_branch
          %682 = sbr.rel (%p680) target = $region36
        $region35: #{multimodal_forward.2} parent=31 // pred_region
          %684 = vsyncadd %s676, 0
          %s685 = smul.addr %s17, 8
          %s686 = scalar_lea.hbm %s3, %s685
          %s688 = sshll.u32 %s679, 4
          %s689 = int_to_ptr.vmem [resolvable:$true] %s688
          %s690 = sshll.u32 %s686, 4
          %s691 = int_to_ptr.hbm [resolvable:$true] %s690
          %693 = dma.vmem_to_hbm [thread:$0]  %s689, 128, %s691, %s676
        $region36: #{multimodal_forward.2} parent=31 // pred_fallthru
          _
      $region32: #{multimodal_forward.2} parent=5 // pred_fallthru
        _
      %p694 = scmp.le.s32.totalorder 2, %s12
      // Predicated region
      $region37: #{multimodal_forward.2} parent=5 // pred_check
        %p695 = pneg %p694
      $region38: #{multimodal_forward.2} parent=5 // pred_check_branch
        %697 = sbr.rel (%p695) target = $region40
      $region39: #{multimodal_forward.2} parent=5 // pred_region
        %s698 = ssub.s32 %s12, 2
        // Predicated region
        $region41: #{multimodal_forward.2} parent=39 // pred_check
          %p699 = pneg %p109
        $region42: #{multimodal_forward.2} parent=39 // pred_check_branch
          %701 = sbr.rel (%p699) target = $region44
        $region43: #{multimodal_forward.2} parent=39 // pred_region
          %s702 = sand.u32 %s94, 1
          %s703 = scalar_lea.sflag [#allocation3], %s702
          %s704 = sand.u32 %s94, 1
          %s705 = smul.addr %s704, 8
          %s706 = scalar_lea.vmem [#allocation2], %s705
          %708 = dma.done %s703, 128
        $region44: #{multimodal_forward.2} parent=39 // pred_fallthru
          _
      $region40: #{multimodal_forward.2} parent=5 // pred_fallthru
        _
    $region6: #{multimodal_forward.2} parent=1 // loop_footer
      %s16 = sadd.s32 1, %s12
    $region7: #{multimodal_forward.2} parent=1 // loop_footer_branch
      %11 = sbr.rel target = $region3
    $region8: #{multimodal_forward.2} parent=1 // loop_exit
      _
    %709 = vsyncpa [#allocation3], 1
    %s710 = scalar_lea.sflag [#allocation3], 1
    %711 = vsyncpa %s710, 1

</llo_original>
